<compile_context>
chip_gen: v5e
topology: v5e:2x2
jax: 0.10.0
libtpu: 0.0.40
codegen_flags: <defaults>
</compile_context>

<pallas_src>
import jax
import jax.numpy as jnp
from jax import lax
from jax.experimental import pallas as pl
from jax.experimental.pallas import tpu as pltpu

# ---------------------------------------------------------------------------
# model dims (small, consistent with the module's forward semantics)
# ---------------------------------------------------------------------------
B = 8            # total batch (stacked micro-batches; amortizes the call)
S = 16           # source length
T = 8            # target length (unroll_steps = trg_input.size(1))
H = 32           # hidden size
V = 128          # target vocab size (lane-dense output)
SRC_VOCAB = 64

BBLK = 4         # batches processed per grid step
NB = B // BBLK   # grid size (sharded across TensorCores on v7x)

BS_BLK = BBLK * S
BT_BLK = BBLK * T


# ---------------------------------------------------------------------------
# fused Pallas kernel: embeddings -> encode -> masked cross-attn decode ->
# vocab logits, for one block of BBLK sequences.  Weights/tables are
# VMEM-resident across all grid steps (constant index_maps).
# ---------------------------------------------------------------------------
def _fused_block_kernel(src_ids_ref, trg_ids_ref, bias_ref,
                        enc_tab_ref, b_enc_ref, emb_trg_ref,
                        wq_ref, wkv_ref, wo_ref, bo_ref,
                        out_ref):
    # src_ids_ref: [BS_BLK, 1] int32     trg_ids_ref: [BT_BLK, 1] int32
    # bias_ref:    [BBLK, 1, S] f32 additive mask (0 keep / -1e9 pad)
    # enc_tab_ref: [SRC_VOCAB, H] bf16   (= emb_src @ w_enc, folded)
    # emb_trg_ref: [V, H] bf16
    # wq:[H,H] wkv:[H,2H] wo:[H,V] bf16  b_enc:[1,H] bo:[1,V] f32
    # out_ref:     [BT_BLK, V] f32 vocab logits (lane-dense)
    f32, bf16 = jnp.float32, jnp.bfloat16

    # --- embedding gathers as one-hot @ table on the MXU (exact for in-range
    #     ids; toy-sized tables stay fully VMEM-resident).  Ids arrive as a
    #     [N, 1] column; fine at these sizes (see review note on SMEM ids).
    src_oh = (src_ids_ref[...] ==
              lax.broadcasted_iota(jnp.int32, (BS_BLK, SRC_VOCAB), 1)
              ).astype(bf16)                                      # [BS_BLK, SRC_VOCAB]
    trg_oh = (trg_ids_ref[...] ==
              lax.broadcasted_iota(jnp.int32, (BT_BLK, V), 1)
              ).astype(bf16)                                      # [BT_BLK, V]

    # --- encoder: relu(one_hot @ (emb_src @ w_enc) + b)  (fused table)
    enc = jnp.maximum(
        jnp.dot(src_oh, enc_tab_ref[...], preferred_element_type=f32)
        + b_enc_ref[...], 0.0)                                    # [BS_BLK, H] f32

    trg_emb = jnp.dot(trg_oh, emb_trg_ref[...],
                      preferred_element_type=f32)                 # [BT_BLK, H] f32

    # --- decoder projections on tall 2-D slabs (bf16 MXU operands, f32 acc);
    #     wk||wv fused into a single matmul.
    q = jnp.dot(trg_emb.astype(bf16), wq_ref[...],
                preferred_element_type=f32)                       # [BT_BLK, H]
    kv = jnp.dot(enc.astype(bf16), wkv_ref[...],
                 preferred_element_type=f32)                      # [BS_BLK, 2H]
    k = kv[:, :H]
    v = kv[:, H:]

    # --- per-sequence attention (batched, no folded-batch O(B^2) scores)
    q3 = q.reshape(BBLK, T, H)
    k3 = k.reshape(BBLK, S, H)
    v3 = v.reshape(BBLK, S, H)

    scores = jnp.einsum("btk,bsk->bts", q3, k3,
                        preferred_element_type=f32) * f32(H ** -0.5)
    scores = scores + bias_ref[...]                               # [BBLK, T, S]

    m = jnp.max(scores, axis=-1, keepdims=True)
    p = jnp.exp(scores - m)
    p = p * pl.reciprocal(jnp.sum(p, axis=-1, keepdims=True), approx=True)

    ctx = jnp.einsum("bts,bsh->bth", p.astype(bf16), v3.astype(bf16),
                     preferred_element_type=f32)                  # [BBLK, T, H]

    # --- residual with target embedding, lane-dense vocab projection
    h2 = (ctx.reshape(BT_BLK, H) + trg_emb).astype(bf16)
    logits = jnp.dot(h2, wo_ref[...], preferred_element_type=f32) + bo_ref[...]
    out_ref[...] = logits                                         # [BT_BLK, V]


# ---------------------------------------------------------------------------
# parameters
# ---------------------------------------------------------------------------
def init_params(key):
    """Raw (module-like) parameters in f32."""
    keys = jax.random.split(key, 8)
    scale = 0.02
    return {
        "emb_src": scale * jax.random.normal(keys[0], (SRC_VOCAB, H), jnp.float32),
        "emb_trg": scale * jax.random.normal(keys[1], (V, H), jnp.float32),
        "w_enc":   scale * jax.random.normal(keys[2], (H, H), jnp.float32),
        "b_enc":   jnp.zeros((1, H), jnp.float32),
        "wq":      scale * jax.random.normal(keys[3], (H, H), jnp.float32),
        "wk":      scale * jax.random.normal(keys[4], (H, H), jnp.float32),
        "wv":      scale * jax.random.normal(keys[5], (H, H), jnp.float32),
        "wo":      scale * jax.random.normal(keys[6], (H, V), jnp.float32),
        "bo":      jnp.zeros((1, V), jnp.float32),
    }


def prepare_params(raw):
    """Kernel-ready params: fold emb_src@w_enc, fuse wk||wv, bf16 MXU weights.

    Algebraically identical to the module's embed -> encode -> decode
    composition; biases stay f32.
    """
    bf16 = jnp.bfloat16
    return {
        "enc_tab": (raw["emb_src"] @ raw["w_enc"]).astype(bf16),          # [SRC_VOCAB, H]
        "b_enc":   raw["b_enc"].astype(jnp.float32),                      # [1, H]
        "emb_trg": raw["emb_trg"].astype(bf16),                           # [V, H]
        "wq":      raw["wq"].astype(bf16),                                # [H, H]
        "wkv":     jnp.concatenate([raw["wk"], raw["wv"]], 1).astype(bf16),  # [H, 2H]
        "wo":      raw["wo"].astype(bf16),                                # [H, V]
        "bo":      raw["bo"].astype(jnp.float32),                         # [1, V]
    }


# ---------------------------------------------------------------------------
# forward (mirrors _Model.forward: encode -> decode with
# unroll_steps = trg_input.shape[1], output_key='vocab')
# ---------------------------------------------------------------------------
@jax.jit
def model_forward(prep, src_tokens, trg_input, src_mask):
    src_ids = src_tokens.reshape(B * S, 1).astype(jnp.int32)
    trg_ids = trg_input.reshape(B * T, 1).astype(jnp.int32)
    # precomputed additive attention bias from the source padding mask
    bias = jnp.where(src_mask > 0.0, 0.0, -1e9).astype(jnp.float32)  # [B, 1, S]

    logits2d = pl.pallas_call(
        _fused_block_kernel,
        out_shape=jax.ShapeDtypeStruct((B * T, V), jnp.float32),
        grid_spec=pltpu.PrefetchScalarGridSpec(
            num_scalar_prefetch=0,
            grid=(NB,),
            in_specs=[
                # per-block activations
                pl.BlockSpec((BS_BLK, 1), lambda i: (i, 0)),        # src ids
                pl.BlockSpec((BT_BLK, 1), lambda i: (i, 0)),        # trg ids
                pl.BlockSpec((BBLK, 1, S), lambda i: (i, 0, 0)),    # mask bias
                # weights / tables: constant index_map -> fetched once,
                # VMEM-resident across all grid steps
                pl.BlockSpec((SRC_VOCAB, H), lambda i: (0, 0)),     # enc_tab
                pl.BlockSpec((1, H), lambda i: (0, 0)),             # b_enc
                pl.BlockSpec((V, H), lambda i: (0, 0)),             # emb_trg
                pl.BlockSpec((H, H), lambda i: (0, 0)),             # wq
                pl.BlockSpec((H, 2 * H), lambda i: (0, 0)),         # wkv
                pl.BlockSpec((H, V), lambda i: (0, 0)),             # wo
                pl.BlockSpec((1, V), lambda i: (0, 0)),             # bo
            ],
            out_specs=pl.BlockSpec((BT_BLK, V), lambda i: (i, 0)),
        ),
        compiler_params=pltpu.CompilerParams(
            dimension_semantics=("parallel",)),
    )(src_ids, trg_ids, bias,
      prep["enc_tab"], prep["b_enc"], prep["emb_trg"],
      prep["wq"], prep["wkv"], prep["wo"], prep["bo"])

    return logits2d.reshape(B, T, V)                               # [B, T, V]


# pure-JAX reference (same math / same bf16 operand rounding so the check
# only absorbs the approx-reciprocal softmax); algebraically identical to the
# module's embed -> encode(linear+relu) -> masked cross-attn decode -> vocab.
def reference_forward(prep, src_tokens, trg_input, src_mask):
    f32, bf16 = jnp.float32, jnp.bfloat16
    enc = jnp.maximum(prep["enc_tab"][src_tokens].astype(f32)
                      + prep["b_enc"][0], 0.0)                     # [B, S, H]
    trg_emb = prep["emb_trg"][trg_input].astype(f32)               # [B, T, H]
    q = jnp.einsum("bth,hk->btk", trg_emb.astype(bf16), prep["wq"],
                   preferred_element_type=f32)
    kv = jnp.einsum("bsh,hk->bsk", enc.astype(bf16), prep["wkv"],
                    preferred_element_type=f32)
    k, v = kv[..., :H], kv[..., H:]
    scores = jnp.einsum("btk,bsk->bts", q, k,
                        preferred_element_type=f32) * jnp.float32(H ** -0.5)
    scores = jnp.where(src_mask > 0.0, scores, -1e9)
    p = jax.nn.softmax(scores, axis=-1)
    ctx = jnp.einsum("bts,bsh->bth", p.astype(bf16), v.astype(bf16),
                     preferred_element_type=f32)
    return jnp.einsum("bth,hv->btv", (ctx + trg_emb).astype(bf16), prep["wo"],
                      preferred_element_type=f32) + prep["bo"][0]


# ---------------------------------------------------------------------------
if __name__ == "__main__":
    key = jax.random.PRNGKey(0)
    kp, ks, kt = jax.random.split(key, 3)

    raw = init_params(kp)
    prep = prepare_params(raw)

    src_tokens = jax.random.randint(ks, (B, S), 0, SRC_VOCAB, dtype=jnp.int32)
    trg_input = jax.random.randint(kt, (B, T), 0, V, dtype=jnp.int32)
    # src_mask: [B, 1, S]; a couple of batch elements have padded positions
    src_mask = jnp.ones((B, 1, S), dtype=jnp.float32)
    src_mask = src_mask.at[1, 0, S - 4:].set(0.0)
    src_mask = src_mask.at[5, 0, S - 7:].set(0.0)
    # TODO(synk): run_batch's autoregressive greedy/beam-search loops are
    # host-side control flow and are not translated to a Pallas kernel.
    # NOTE: the one-hot embedding / single-block vocab projection only scale
    # to toy vocab sizes; a real vocab needs a row-gather + tiled projection.

    logits = model_forward(prep, src_tokens, trg_input, src_mask)
    jax.block_until_ready(logits)

    assert logits.shape == (B, T, V) and logits.dtype == jnp.float32
    assert bool(jnp.all(jnp.isfinite(logits)))

    # numerical sanity check vs pure-JAX reference (approx reciprocal in the
    # softmax -> loose-but-meaningful tolerance)
    ref = reference_forward(prep, src_tokens, trg_input, src_mask)
    assert bool(jnp.allclose(logits, ref, rtol=1e-2, atol=1e-3))

    print("KERNEL_OK")
</pallas_src>

<mosaic_0001>
module attributes {stable_mosaic.version = 11 : i64} {
  func.func @_fused_block_kernel(%arg0: i32, %arg1: memref<64x1xi32, #tpu.memory_space<vmem>>, %arg2: memref<32x1xi32, #tpu.memory_space<vmem>>, %arg3: memref<4x1x16xf32, #tpu.memory_space<vmem>>, %arg4: memref<64x32xbf16, #tpu.memory_space<vmem>>, %arg5: memref<1x32xf32, #tpu.memory_space<vmem>>, %arg6: memref<128x32xbf16, #tpu.memory_space<vmem>>, %arg7: memref<32x32xbf16, #tpu.memory_space<vmem>>, %arg8: memref<32x64xbf16, #tpu.memory_space<vmem>>, %arg9: memref<32x128xbf16, #tpu.memory_space<vmem>>, %arg10: memref<1x128xf32, #tpu.memory_space<vmem>>, %arg11: memref<32x128xf32, #tpu.memory_space<vmem>>) attributes {dimension_semantics = [#tpu.dimension_semantics<parallel>], iteration_bounds = array<i64: 2>, scalar_prefetch = 0 : i64, scratch_operands = 0 : i64, tpu.core_type = #tpu.core_type<tc>, window_params = [{transform_indices = @transform_0, window_bounds = array<i64: 64, 1>}, {transform_indices = @transform_1, window_bounds = array<i64: 32, 1>}, {transform_indices = @transform_2, window_bounds = array<i64: 4, 1, 16>}, {pipeline_mode = #tpu.pipeline_mode<synchronous>, transform_indices = @transform_3, window_bounds = array<i64: 64, 32>}, {pipeline_mode = #tpu.pipeline_mode<synchronous>, transform_indices = @transform_4, window_bounds = array<i64: 1, 32>}, {pipeline_mode = #tpu.pipeline_mode<synchronous>, transform_indices = @transform_5, window_bounds = array<i64: 128, 32>}, {pipeline_mode = #tpu.pipeline_mode<synchronous>, transform_indices = @transform_6, window_bounds = array<i64: 32, 32>}, {pipeline_mode = #tpu.pipeline_mode<synchronous>, transform_indices = @transform_7, window_bounds = array<i64: 32, 64>}, {pipeline_mode = #tpu.pipeline_mode<synchronous>, transform_indices = @transform_8, window_bounds = array<i64: 32, 128>}, {pipeline_mode = #tpu.pipeline_mode<synchronous>, transform_indices = @transform_9, window_bounds = array<i64: 1, 128>}, {transform_indices = @transform_10, window_bounds = array<i64: 32, 128>}]} {
    %c0 = arith.constant 0 : index
    %c0_0 = arith.constant 0 : index
    %0 = vector.load %arg1[%c0, %c0_0] : memref<64x1xi32, #tpu.memory_space<vmem>>, vector<64x1xi32>
    %1 = tpu.iota {dimensions = array<i32: 1>} : vector<64x64xi32>
    %2 = vector.broadcast %0 : vector<64x1xi32> to vector<64x64xi32>
    %3 = arith.cmpi eq, %2, %1 : vector<64x64xi32>
    %4 = arith.extui %3 : vector<64x64xi1> to vector<64x64xi32>
    %5 = arith.sitofp %4 : vector<64x64xi32> to vector<64x64xf32>
    %6 = arith.truncf %5 : vector<64x64xf32> to vector<64x64xbf16>
    %c0_1 = arith.constant 0 : index
    %c0_2 = arith.constant 0 : index
    %7 = vector.load %arg2[%c0_1, %c0_2] : memref<32x1xi32, #tpu.memory_space<vmem>>, vector<32x1xi32>
    %8 = tpu.iota {dimensions = array<i32: 1>} : vector<32x128xi32>
    %9 = vector.broadcast %7 : vector<32x1xi32> to vector<32x128xi32>
    %10 = arith.cmpi eq, %9, %8 : vector<32x128xi32>
    %11 = arith.extui %10 : vector<32x128xi1> to vector<32x128xi32>
    %12 = arith.sitofp %11 : vector<32x128xi32> to vector<32x128xf32>
    %13 = arith.truncf %12 : vector<32x128xf32> to vector<32x128xbf16>
    %c0_3 = arith.constant 0 : index
    %c0_4 = arith.constant 0 : index
    %14 = vector.load %arg4[%c0_3, %c0_4] : memref<64x32xbf16, #tpu.memory_space<vmem>>, vector<64x32xbf16>
    %cst = arith.constant dense<0.000000e+00> : vector<64x32xf32>
    %15 = tpu.matmul %6, %14, %cst {dimension_numbers = #tpu.dot_dimension_numbers<[1], [0], [0], [1], [0, 0, 1, 1], [], []>} : vector<64x64xbf16>, vector<64x32xbf16>, vector<64x32xf32> -> vector<64x32xf32>
    %c0_5 = arith.constant 0 : index
    %c0_6 = arith.constant 0 : index
    %16 = vector.load %arg5[%c0_5, %c0_6] : memref<1x32xf32, #tpu.memory_space<vmem>>, vector<1x32xf32>
    %17 = vector.broadcast %16 : vector<1x32xf32> to vector<64x32xf32>
    %18 = arith.addf %15, %17 : vector<64x32xf32>
    %cst_7 = arith.constant 0.000000e+00 : f32
    %19 = vector.broadcast %cst_7 : f32 to vector<64x32xf32>
    %20 = arith.maximumf %18, %19 : vector<64x32xf32>
    %c0_8 = arith.constant 0 : index
    %c0_9 = arith.constant 0 : index
    %21 = vector.load %arg6[%c0_8, %c0_9] : memref<128x32xbf16, #tpu.memory_space<vmem>>, vector<128x32xbf16>
    %cst_10 = arith.constant dense<0.000000e+00> : vector<32x32xf32>
    %22 = tpu.matmul %13, %21, %cst_10 {dimension_numbers = #tpu.dot_dimension_numbers<[1], [0], [0], [1], [0, 0, 1, 1], [], []>} : vector<32x128xbf16>, vector<128x32xbf16>, vector<32x32xf32> -> vector<32x32xf32>
    %23 = arith.truncf %22 : vector<32x32xf32> to vector<32x32xbf16>
    %c0_11 = arith.constant 0 : index
    %c0_12 = arith.constant 0 : index
    %24 = vector.load %arg7[%c0_11, %c0_12] : memref<32x32xbf16, #tpu.memory_space<vmem>>, vector<32x32xbf16>
    %cst_13 = arith.constant dense<0.000000e+00> : vector<32x32xf32>
    %25 = tpu.matmul %23, %24, %cst_13 {dimension_numbers = #tpu.dot_dimension_numbers<[1], [0], [0], [1], [0, 0, 1, 1], [], []>} : vector<32x32xbf16>, vector<32x32xbf16>, vector<32x32xf32> -> vector<32x32xf32>
    %26 = arith.truncf %20 : vector<64x32xf32> to vector<64x32xbf16>
    %c0_14 = arith.constant 0 : index
    %c0_15 = arith.constant 0 : index
    %27 = vector.load %arg8[%c0_14, %c0_15] : memref<32x64xbf16, #tpu.memory_space<vmem>>, vector<32x64xbf16>
    %cst_16 = arith.constant dense<0.000000e+00> : vector<64x64xf32>
    %28 = tpu.matmul %26, %27, %cst_16 {dimension_numbers = #tpu.dot_dimension_numbers<[1], [0], [0], [1], [0, 0, 1, 1], [], []>} : vector<64x32xbf16>, vector<32x64xbf16>, vector<64x64xf32> -> vector<64x64xf32>
    %29 = vector.extract_strided_slice %28 {offsets = [0, 0], sizes = [64, 32], strides = [1, 1]} : vector<64x64xf32> to vector<64x32xf32>
    %30 = vector.extract_strided_slice %28 {offsets = [0, 32], sizes = [64, 32], strides = [1, 1]} : vector<64x64xf32> to vector<64x32xf32>
    %31 = vector.shape_cast %25 : vector<32x32xf32> to vector<4x8x32xf32>
    %32 = vector.shape_cast %29 : vector<64x32xf32> to vector<4x16x32xf32>
    %33 = vector.shape_cast %30 : vector<64x32xf32> to vector<4x16x32xf32>
    "tpu.trace_start"() <{level = 10 : i32, message = "btk,bsk->bts"}> : () -> ()
    %cst_17 = arith.constant dense<0.000000e+00> : vector<4x8x16xf32>
    %34 = tpu.matmul %31, %32, %cst_17 {dimension_numbers = #tpu.dot_dimension_numbers<[2], [2], [1], [1], [0, 0, 0, 1, 1, 1], [0], [0]>} : vector<4x8x32xf32>, vector<4x16x32xf32>, vector<4x8x16xf32> -> vector<4x8x16xf32>
    "tpu.trace_stop"() : () -> ()
    %cst_18 = arith.constant 0.176776692 : f32
    %35 = vector.broadcast %cst_18 : f32 to vector<4x8x16xf32>
    %36 = arith.mulf %34, %35 : vector<4x8x16xf32>
    %c0_19 = arith.constant 0 : index
    %c0_20 = arith.constant 0 : index
    %c0_21 = arith.constant 0 : index
    %37 = vector.load %arg3[%c0_19, %c0_20, %c0_21] : memref<4x1x16xf32, #tpu.memory_space<vmem>>, vector<4x1x16xf32>
    %38 = vector.broadcast %37 : vector<4x1x16xf32> to vector<4x8x16xf32>
    %39 = arith.addf %36, %38 : vector<4x8x16xf32>
    %cst_22 = arith.constant dense<0xFF800000> : vector<4x8xf32>
    %40 = vector.multi_reduction <maximumf>, %39, %cst_22 [2] : vector<4x8x16xf32> to vector<4x8xf32>
    %41 = vector.shape_cast %40 : vector<4x8xf32> to vector<4x8x1xf32>
    %42 = vector.broadcast %41 : vector<4x8x1xf32> to vector<4x8x16xf32>
    %43 = arith.subf %39, %42 : vector<4x8x16xf32>
    %44 = math.exp %43 : vector<4x8x16xf32>
    %cst_23 = arith.constant dense<0.000000e+00> : vector<4x8xf32>
    %45 = vector.multi_reduction <add>, %44, %cst_23 [2] : vector<4x8x16xf32> to vector<4x8xf32>
    %46 = vector.shape_cast %45 : vector<4x8xf32> to vector<4x8x1xf32>
    %47 = tpu.reciprocal %46 {approx = true} : vector<4x8x1xf32> -> vector<4x8x1xf32>
    %48 = vector.broadcast %47 : vector<4x8x1xf32> to vector<4x8x16xf32>
    %49 = arith.mulf %44, %48 : vector<4x8x16xf32>
    %50 = arith.truncf %49 : vector<4x8x16xf32> to vector<4x8x16xbf16>
    %51 = arith.truncf %33 : vector<4x16x32xf32> to vector<4x16x32xbf16>
    "tpu.trace_start"() <{level = 10 : i32, message = "bts,bsh->bth"}> : () -> ()
    %cst_24 = arith.constant dense<0.000000e+00> : vector<4x8x32xf32>
    %52 = tpu.matmul %50, %51, %cst_24 {dimension_numbers = #tpu.dot_dimension_numbers<[2], [1], [1], [2], [0, 0, 0, 1, 1, 2], [0], [0]>} : vector<4x8x16xbf16>, vector<4x16x32xbf16>, vector<4x8x32xf32> -> vector<4x8x32xf32>
    "tpu.trace_stop"() : () -> ()
    %53 = vector.shape_cast %52 : vector<4x8x32xf32> to vector<32x32xf32>
    %54 = arith.addf %53, %22 : vector<32x32xf32>
    %55 = arith.truncf %54 : vector<32x32xf32> to vector<32x32xbf16>
    %c0_25 = arith.constant 0 : index
    %c0_26 = arith.constant 0 : index
    %56 = vector.load %arg9[%c0_25, %c0_26] : memref<32x128xbf16, #tpu.memory_space<vmem>>, vector<32x128xbf16>
    %cst_27 = arith.constant dense<0.000000e+00> : vector<32x128xf32>
    %57 = tpu.matmul %55, %56, %cst_27 {dimension_numbers = #tpu.dot_dimension_numbers<[1], [0], [0], [1], [0, 0, 1, 1], [], []>} : vector<32x32xbf16>, vector<32x128xbf16>, vector<32x128xf32> -> vector<32x128xf32>
    %c0_28 = arith.constant 0 : index
    %c0_29 = arith.constant 0 : index
    %58 = vector.load %arg10[%c0_28, %c0_29] : memref<1x128xf32, #tpu.memory_space<vmem>>, vector<1x128xf32>
    %59 = vector.broadcast %58 : vector<1x128xf32> to vector<32x128xf32>
    %60 = arith.addf %57, %59 : vector<32x128xf32>
    %c0_30 = arith.constant 0 : index
    %c0_31 = arith.constant 0 : index
    %61 = vector.load %arg11[%c0_30, %c0_31] : memref<32x128xf32, #tpu.memory_space<vmem>>, vector<32x128xf32>
    tpu.vector_store %arg11[%c0_30, %c0_31], %60 {strides = array<i32>} : memref<32x128xf32, #tpu.memory_space<vmem>>, vector<32x128xf32>,
    return
  }
  func.func @transform_0(%arg0: i32) -> (i32, i32) {
    %c0_i32 = arith.constant 0 : i32
    %c0_i32_0 = arith.constant 0 : i32
    return %arg0, %c0_i32 : i32, i32
  }
  func.func @transform_1(%arg0: i32) -> (i32, i32) {
    %c0_i32 = arith.constant 0 : i32
    %c0_i32_0 = arith.constant 0 : i32
    return %arg0, %c0_i32 : i32, i32
  }
  func.func @transform_2(%arg0: i32) -> (i32, i32, i32) {
    %c0_i32 = arith.constant 0 : i32
    %c0_i32_0 = arith.constant 0 : i32
    %c0_i32_1 = arith.constant 0 : i32
    return %arg0, %c0_i32, %c0_i32_0 : i32, i32, i32
  }
  func.func @transform_3(%arg0: i32) -> (i32, i32) {
    %c0_i32 = arith.constant 0 : i32
    %c0_i32_0 = arith.constant 0 : i32
    %c0_i32_1 = arith.constant 0 : i32
    return %c0_i32, %c0_i32_0 : i32, i32
  }
  func.func @transform_4(%arg0: i32) -> (i32, i32) {
    %c0_i32 = arith.constant 0 : i32
    %c0_i32_0 = arith.constant 0 : i32
    %c0_i32_1 = arith.constant 0 : i32
    return %c0_i32, %c0_i32_0 : i32, i32
  }
  func.func @transform_5(%arg0: i32) -> (i32, i32) {
    %c0_i32 = arith.constant 0 : i32
    %c0_i32_0 = arith.constant 0 : i32
    %c0_i32_1 = arith.constant 0 : i32
    return %c0_i32, %c0_i32_0 : i32, i32
  }
  func.func @transform_6(%arg0: i32) -> (i32, i32) {
    %c0_i32 = arith.constant 0 : i32
    %c0_i32_0 = arith.constant 0 : i32
    %c0_i32_1 = arith.constant 0 : i32
    return %c0_i32, %c0_i32_0 : i32, i32
  }
  func.func @transform_7(%arg0: i32) -> (i32, i32) {
    %c0_i32 = arith.constant 0 : i32
    %c0_i32_0 = arith.constant 0 : i32
    %c0_i32_1 = arith.constant 0 : i32
    return %c0_i32, %c0_i32_0 : i32, i32
  }
  func.func @transform_8(%arg0: i32) -> (i32, i32) {
    %c0_i32 = arith.constant 0 : i32
    %c0_i32_0 = arith.constant 0 : i32
    %c0_i32_1 = arith.constant 0 : i32
    return %c0_i32, %c0_i32_0 : i32, i32
  }
  func.func @transform_9(%arg0: i32) -> (i32, i32) {
    %c0_i32 = arith.constant 0 : i32
    %c0_i32_0 = arith.constant 0 : i32
    %c0_i32_1 = arith.constant 0 : i32
    return %c0_i32, %c0_i32_0 : i32, i32
  }
  func.func @transform_10(%arg0: i32) -> (i32, i32) {
    %c0_i32 = arith.constant 0 : i32
    %c0_i32_0 = arith.constant 0 : i32
    return %arg0, %c0_i32 : i32, i32
  }
}

</mosaic_0001>

<llo_original>
// kernel: model_forward.1
$region0: #{model_forward.1}
  #allocation0 [shape = 'u32[]', space=smem, size = 0x4, offset = 0x4, fixed_abs, tag = 'smem constant byte address 0x4 - core index']
  #allocation1 [shape = 'u32[72,128]{1,0:T(1,128)}', space=vmem, size = 0x9000, scoped, tag = 'internal scratch']
  %s0 = inlined_call_operand.vmem [shape: s32[128,1], index: 0, kind: input, shape index: {}]
  %s1 = inlined_call_operand.vmem [shape: s32[64,1], index: 1, kind: input, shape index: {}]
  %s2 = inlined_call_operand.vmem [shape: f32[8,1,16], index: 2, kind: input, shape index: {}]
  %s3 = inlined_call_operand.vmem [shape: bf16[64,32], index: 3, kind: input, shape index: {}]
  %s4 = inlined_call_operand.vmem [shape: f32[1,32], index: 4, kind: input, shape index: {}]
  %s5 = inlined_call_operand.vmem [shape: bf16[128,32], index: 5, kind: input, shape index: {}]
  %s6 = inlined_call_operand.vmem [shape: bf16[32,32], index: 6, kind: input, shape index: {}]
  %s7 = inlined_call_operand.vmem [shape: bf16[32,64], index: 7, kind: input, shape index: {}]
  %s8 = inlined_call_operand.vmem [shape: bf16[32,128], index: 8, kind: input, shape index: {}]
  %s9 = inlined_call_operand.vmem [shape: f32[1,128], index: 9, kind: input, shape index: {}]
  %s10 = inlined_call_operand.hbm [shape: f32[64,128], index: 10, kind: output, shape index: {}]
  %s11 = sld [smem:[#allocation0]]
  $region73: #{model_forward.1} parent=0
    _
  %s13 = ssub.s32 1, %s11
  %s14 = scalar_select 0, %s13, %s11
  $region1: #{model_forward.1} parent=0
    #allocation2 [shape = 'u8[32768]{0}', space=vmem, size = 0x8000, scoped, tag = 'output window, operand 0']
    #allocation3 [shape = 's32[2]{0}', space=sflag, size = 0x8, scoped, tag = 'scoped memory for model_forward.1']
    %15 = vsyncpa [#allocation3], 0
    %s16 = scalar_lea.sflag [#allocation3], 1
    %17 = vsyncpa %s16, 0
    loop: start=0, step=1, limit=4
    $region2: #{model_forward.1} parent=1 // loop_pre_header
      _
    $region3: #{model_forward.1} parent=1 // loop_header
      %s19 = sphi 0, %s23
      %p20 = scmp.ge.s32.totalorder %s19, 4
      %s29 = sphi 0, %s31
      %s32 = sphi 0, %s29
      %s33 = sphi 0, %s32
      %s49 = sphi 0, %s33
      %s55 = sphi 0, %s57
      %s58 = sphi 0, %s55
      %s59 = sphi 0, %s58
      %s75 = sphi 0, %s59
      %s81 = sphi 0, %s83
      %s84 = sphi 0, %s81
      %s85 = sphi 0, %s84
      %s101 = sphi 0, %s85
      %s105 = sphi 0, %s105
      %s107 = sphi 0, %s105
      %s108 = sphi 0, %s107
      %s122 = sphi 0, %s108
      %s126 = sphi 0, %s126
      %s128 = sphi 0, %s126
      %s129 = sphi 0, %s128
      %s143 = sphi 0, %s129
      %s147 = sphi 0, %s147
      %s149 = sphi 0, %s147
      %s150 = sphi 0, %s149
      %s164 = sphi 0, %s150
      %s168 = sphi 0, %s168
      %s170 = sphi 0, %s168
      %s171 = sphi 0, %s170
      %s185 = sphi 0, %s171
      %s189 = sphi 0, %s189
      %s191 = sphi 0, %s189
      %s192 = sphi 0, %s191
      %s206 = sphi 0, %s192
      %s210 = sphi 0, %s210
      %s212 = sphi 0, %s210
      %s213 = sphi 0, %s212
      %s227 = sphi 0, %s213
      %s231 = sphi 0, %s231
      %s233 = sphi 0, %s231
      %s234 = sphi 0, %s233
      %s248 = sphi 0, %s234
      %s254 = sphi 0, %s256
      %s257 = sphi 0, %s254
      %s258 = sphi 0, %s257
      %s274 = sphi 0, %s258
    $region4: #{model_forward.1} parent=1 // loop_header_branch
      %22 = sbr.rel (%p20) target = $region8
    $region5: #{model_forward.1} parent=1 // loop_body
      %s24 = ssub.s32 %s19, 1
      %s25 = ssub.s32 %s19, 2
      %s26 = sadd.s32 %s19, 1
      %s27 = ssub.s32 %s19, %s26
      %p28 = scmp.eq.s32.totalorder %s27, 0
      %s30 = sadd.s32 %s29, 1
      %s31 = scalar_select %p28, %s29, %s30
      %p34 = pneg %p28
      %p35 = scmp.eq.s32.totalorder %s19, 1
      %p36 = por %p34, %p35
      %p37 = scmp.ne.s32.totalorder %s29, %s32
      %p38 = scmp.eq.s32.totalorder %s19, 0
      %p39 = por %p37, %p38
      %p40 = scmp.ne.s32.totalorder %s29, %s32
      %p41 = scmp.eq.s32.totalorder %s24, 1
      %p42 = por %p40, %p41
      %p43 = scmp.ne.s32.totalorder %s32, %s33
      %p44 = scmp.eq.s32.totalorder %s24, 0
      %p45 = por %p43, %p44
      %p46 = scmp.ne.s32.totalorder %s32, %s33
      %p47 = scmp.eq.s32.totalorder %s25, 1
      %p48 = por %p46, %p47
      %p50 = scmp.ne.s32.totalorder %s33, %s49
      %p51 = scmp.eq.s32.totalorder %s25, 0
      %p52 = por %p50, %p51
      %s53 = ssub.s32 %s19, %s26
      %p54 = scmp.eq.s32.totalorder %s53, 0
      %s56 = sadd.s32 %s55, 1
      %s57 = scalar_select %p54, %s55, %s56
      %p60 = pneg %p54
      %p61 = scmp.eq.s32.totalorder %s19, 1
      %p62 = por %p60, %p61
      %p63 = scmp.ne.s32.totalorder %s55, %s58
      %p64 = scmp.eq.s32.totalorder %s19, 0
      %p65 = por %p63, %p64
      %p66 = scmp.ne.s32.totalorder %s55, %s58
      %p67 = scmp.eq.s32.totalorder %s24, 1
      %p68 = por %p66, %p67
      %p69 = scmp.ne.s32.totalorder %s58, %s59
      %p70 = scmp.eq.s32.totalorder %s24, 0
      %p71 = por %p69, %p70
      %p72 = scmp.ne.s32.totalorder %s58, %s59
      %p73 = scmp.eq.s32.totalorder %s25, 1
      %p74 = por %p72, %p73
      %p76 = scmp.ne.s32.totalorder %s59, %s75
      %p77 = scmp.eq.s32.totalorder %s25, 0
      %p78 = por %p76, %p77
      %s79 = ssub.s32 %s19, %s26
      %p80 = scmp.eq.s32.totalorder %s79, 0
      %s82 = sadd.s32 %s81, 1
      %s83 = scalar_select %p80, %s81, %s82
      %p86 = pneg %p80
      %p87 = scmp.eq.s32.totalorder %s19, 1
      %p88 = por %p86, %p87
      %p89 = scmp.ne.s32.totalorder %s81, %s84
      %p90 = scmp.eq.s32.totalorder %s19, 0
      %p91 = por %p89, %p90
      %p92 = scmp.ne.s32.totalorder %s81, %s84
      %p93 = scmp.eq.s32.totalorder %s24, 1
      %p94 = por %p92, %p93
      %p95 = scmp.ne.s32.totalorder %s84, %s85
      %p96 = scmp.eq.s32.totalorder %s24, 0
      %p97 = por %p95, %p96
      %p98 = scmp.ne.s32.totalorder %s84, %s85
      %p99 = scmp.eq.s32.totalorder %s25, 1
      %p100 = por %p98, %p99
      %p102 = scmp.ne.s32.totalorder %s85, %s101
      %p103 = scmp.eq.s32.totalorder %s25, 0
      %p104 = por %p102, %p103
      %s106 = sadd.s32 %s105, 1
      %p109 = scmp.eq.s32.totalorder %s19, 1
      %p110 = scmp.ne.s32.totalorder %s105, %s107
      %p111 = scmp.eq.s32.totalorder %s19, 0
      %p112 = por %p110, %p111
      %p113 = scmp.ne.s32.totalorder %s105, %s107
      %p114 = scmp.eq.s32.totalorder %s24, 1
      %p115 = por %p113, %p114
      %p116 = scmp.ne.s32.totalorder %s107, %s108
      %p117 = scmp.eq.s32.totalorder %s24, 0
      %p118 = por %p116, %p117
      %p119 = scmp.ne.s32.totalorder %s107, %s108
      %p120 = scmp.eq.s32.totalorder %s25, 1
      %p121 = por %p119, %p120
      %p123 = scmp.ne.s32.totalorder %s108, %s122
      %p124 = scmp.eq.s32.totalorder %s25, 0
      %p125 = por %p123, %p124
      %s127 = sadd.s32 %s126, 1
      %p130 = scmp.eq.s32.totalorder %s19, 1
      %p131 = scmp.ne.s32.totalorder %s126, %s128
      %p132 = scmp.eq.s32.totalorder %s19, 0
      %p133 = por %p131, %p132
      %p134 = scmp.ne.s32.totalorder %s126, %s128
      %p135 = scmp.eq.s32.totalorder %s24, 1
      %p136 = por %p134, %p135
      %p137 = scmp.ne.s32.totalorder %s128, %s129
      %p138 = scmp.eq.s32.totalorder %s24, 0
      %p139 = por %p137, %p138
      %p140 = scmp.ne.s32.totalorder %s128, %s129
      %p141 = scmp.eq.s32.totalorder %s25, 1
      %p142 = por %p140, %p141
      %p144 = scmp.ne.s32.totalorder %s129, %s143
      %p145 = scmp.eq.s32.totalorder %s25, 0
      %p146 = por %p144, %p145
      %s148 = sadd.s32 %s147, 1
      %p151 = scmp.eq.s32.totalorder %s19, 1
      %p152 = scmp.ne.s32.totalorder %s147, %s149
      %p153 = scmp.eq.s32.totalorder %s19, 0
      %p154 = por %p152, %p153
      %p155 = scmp.ne.s32.totalorder %s147, %s149
      %p156 = scmp.eq.s32.totalorder %s24, 1
      %p157 = por %p155, %p156
      %p158 = scmp.ne.s32.totalorder %s149, %s150
      %p159 = scmp.eq.s32.totalorder %s24, 0
      %p160 = por %p158, %p159
      %p161 = scmp.ne.s32.totalorder %s149, %s150
      %p162 = scmp.eq.s32.totalorder %s25, 1
      %p163 = por %p161, %p162
      %p165 = scmp.ne.s32.totalorder %s150, %s164
      %p166 = scmp.eq.s32.totalorder %s25, 0
      %p167 = por %p165, %p166
      %s169 = sadd.s32 %s168, 1
      %p172 = scmp.eq.s32.totalorder %s19, 1
      %p173 = scmp.ne.s32.totalorder %s168, %s170
      %p174 = scmp.eq.s32.totalorder %s19, 0
      %p175 = por %p173, %p174
      %p176 = scmp.ne.s32.totalorder %s168, %s170
      %p177 = scmp.eq.s32.totalorder %s24, 1
      %p178 = por %p176, %p177
      %p179 = scmp.ne.s32.totalorder %s170, %s171
      %p180 = scmp.eq.s32.totalorder %s24, 0
      %p181 = por %p179, %p180
      %p182 = scmp.ne.s32.totalorder %s170, %s171
      %p183 = scmp.eq.s32.totalorder %s25, 1
      %p184 = por %p182, %p183
      %p186 = scmp.ne.s32.totalorder %s171, %s185
      %p187 = scmp.eq.s32.totalorder %s25, 0
      %p188 = por %p186, %p187
      %s190 = sadd.s32 %s189, 1
      %p193 = scmp.eq.s32.totalorder %s19, 1
      %p194 = scmp.ne.s32.totalorder %s189, %s191
      %p195 = scmp.eq.s32.totalorder %s19, 0
      %p196 = por %p194, %p195
      %p197 = scmp.ne.s32.totalorder %s189, %s191
      %p198 = scmp.eq.s32.totalorder %s24, 1
      %p199 = por %p197, %p198
      %p200 = scmp.ne.s32.totalorder %s191, %s192
      %p201 = scmp.eq.s32.totalorder %s24, 0
      %p202 = por %p200, %p201
      %p203 = scmp.ne.s32.totalorder %s191, %s192
      %p204 = scmp.eq.s32.totalorder %s25, 1
      %p205 = por %p203, %p204
      %p207 = scmp.ne.s32.totalorder %s192, %s206
      %p208 = scmp.eq.s32.totalorder %s25, 0
      %p209 = por %p207, %p208
      %s211 = sadd.s32 %s210, 1
      %p214 = scmp.eq.s32.totalorder %s19, 1
      %p215 = scmp.ne.s32.totalorder %s210, %s212
      %p216 = scmp.eq.s32.totalorder %s19, 0
      %p217 = por %p215, %p216
      %p218 = scmp.ne.s32.totalorder %s210, %s212
      %p219 = scmp.eq.s32.totalorder %s24, 1
      %p220 = por %p218, %p219
      %p221 = scmp.ne.s32.totalorder %s212, %s213
      %p222 = scmp.eq.s32.totalorder %s24, 0
      %p223 = por %p221, %p222
      %p224 = scmp.ne.s32.totalorder %s212, %s213
      %p225 = scmp.eq.s32.totalorder %s25, 1
      %p226 = por %p224, %p225
      %p228 = scmp.ne.s32.totalorder %s213, %s227
      %p229 = scmp.eq.s32.totalorder %s25, 0
      %p230 = por %p228, %p229
      %s232 = sadd.s32 %s231, 1
      %p235 = scmp.eq.s32.totalorder %s19, 1
      %p236 = scmp.ne.s32.totalorder %s231, %s233
      %p237 = scmp.eq.s32.totalorder %s19, 0
      %p238 = por %p236, %p237
      %p239 = scmp.ne.s32.totalorder %s231, %s233
      %p240 = scmp.eq.s32.totalorder %s24, 1
      %p241 = por %p239, %p240
      %p242 = scmp.ne.s32.totalorder %s233, %s234
      %p243 = scmp.eq.s32.totalorder %s24, 0
      %p244 = por %p242, %p243
      %p245 = scmp.ne.s32.totalorder %s233, %s234
      %p246 = scmp.eq.s32.totalorder %s25, 1
      %p247 = por %p245, %p246
      %p249 = scmp.ne.s32.totalorder %s234, %s248
      %p250 = scmp.eq.s32.totalorder %s25, 0
      %p251 = por %p249, %p250
      %s252 = ssub.s32 %s19, %s26
      %p253 = scmp.eq.s32.totalorder %s252, 0
      %s255 = sadd.s32 %s254, 1
      %s256 = scalar_select %p253, %s254, %s255
      %p259 = pneg %p253
      %p260 = scmp.eq.s32.totalorder %s19, 1
      %p261 = por %p259, %p260
      %p262 = scmp.ne.s32.totalorder %s254, %s257
      %p263 = scmp.eq.s32.totalorder %s19, 0
      %p264 = por %p262, %p263
      %p265 = scmp.ne.s32.totalorder %s254, %s257
      %p266 = scmp.eq.s32.totalorder %s24, 1
      %p267 = por %p265, %p266
      %p268 = scmp.ne.s32.totalorder %s257, %s258
      %p269 = scmp.eq.s32.totalorder %s24, 0
      %p270 = por %p268, %p269
      %p271 = scmp.ne.s32.totalorder %s257, %s258
      %p272 = scmp.eq.s32.totalorder %s25, 1
      %p273 = por %p271, %p272
      %p275 = scmp.ne.s32.totalorder %s258, %s274
      %p276 = scmp.eq.s32.totalorder %s25, 0
      %p277 = por %p275, %p276
      %p278 = scmp.le.s32.totalorder 1, %s19
      %p279 = scmp.lt.s32.totalorder %s19, 3
      %p280 = pnand %p278, %p279
      %p281 = pneg %p280
      // Predicated region
      $region9: #{model_forward.1} parent=5 // pred_check
        _
      $region10: #{model_forward.1} parent=5 // pred_check_branch
        %283 = sbr.rel (%p280) target = $region12
      $region11: #{model_forward.1} parent=5 // pred_region
        %s284 = ssub.s32 %s19, 1
        // Predicated region
        $region13: #{model_forward.1} parent=11 // pred_check
          %p285 = pneg %p118
        $region14: #{model_forward.1} parent=11 // pred_check_branch
          %287 = sbr.rel (%p285) target = $region16
        $region15: #{model_forward.1} parent=11 // pred_region
          _
        $region16: #{model_forward.1} parent=11 // pred_fallthru
          _
        // Predicated region
        $region17: #{model_forward.1} parent=11 // pred_check
          %p288 = pneg %p139
        $region18: #{model_forward.1} parent=11 // pred_check_branch
          %290 = sbr.rel (%p288) target = $region20
        $region19: #{model_forward.1} parent=11 // pred_region
          _
        $region20: #{model_forward.1} parent=11 // pred_fallthru
          _
        // Predicated region
        $region21: #{model_forward.1} parent=11 // pred_check
          %p291 = pneg %p160
        $region22: #{model_forward.1} parent=11 // pred_check_branch
          %293 = sbr.rel (%p291) target = $region24
        $region23: #{model_forward.1} parent=11 // pred_region
          _
        $region24: #{model_forward.1} parent=11 // pred_fallthru
          _
        // Predicated region
        $region25: #{model_forward.1} parent=11 // pred_check
          %p294 = pneg %p181
        $region26: #{model_forward.1} parent=11 // pred_check_branch
          %296 = sbr.rel (%p294) target = $region28
        $region27: #{model_forward.1} parent=11 // pred_region
          _
        $region28: #{model_forward.1} parent=11 // pred_fallthru
          _
        // Predicated region
        $region29: #{model_forward.1} parent=11 // pred_check
          %p297 = pneg %p202
        $region30: #{model_forward.1} parent=11 // pred_check_branch
          %299 = sbr.rel (%p297) target = $region32
        $region31: #{model_forward.1} parent=11 // pred_region
          _
        $region32: #{model_forward.1} parent=11 // pred_fallthru
          _
        // Predicated region
        $region33: #{model_forward.1} parent=11 // pred_check
          %p300 = pneg %p223
        $region34: #{model_forward.1} parent=11 // pred_check_branch
          %302 = sbr.rel (%p300) target = $region36
        $region35: #{model_forward.1} parent=11 // pred_region
          _
        $region36: #{model_forward.1} parent=11 // pred_fallthru
          _
        // Predicated region
        $region37: #{model_forward.1} parent=11 // pred_check
          %p303 = pneg %p244
        $region38: #{model_forward.1} parent=11 // pred_check_branch
          %305 = sbr.rel (%p303) target = $region40
        $region39: #{model_forward.1} parent=11 // pred_region
          _
        $region40: #{model_forward.1} parent=11 // pred_fallthru
          _
      $region12: #{model_forward.1} parent=5 // pred_fallthru
        _
      %p306 = scmp.lt.s32.totalorder %s19, 2
      // Predicated region
      $region41: #{model_forward.1} parent=5 // pred_check
        %p307 = pneg %p306
      $region42: #{model_forward.1} parent=5 // pred_check_branch
        %309 = sbr.rel (%p307) target = $region44
      $region43: #{model_forward.1} parent=5 // pred_region
        // Predicated region
        $region45: #{model_forward.1} parent=43 // pred_check
          %p310 = pneg %p39
        $region46: #{model_forward.1} parent=43 // pred_check_branch
          %312 = sbr.rel (%p310) target = $region48
        $region47: #{model_forward.1} parent=43 // pred_region
          %s313 = smul.u32 8, %s19
          %p314 = scmp.lt.s32.totalorder %s313, 15
          %s315 = scalar_select %p314, %s313, 15
          %s316 = smul.addr %s315, 8
          %s317 = scalar_lea.vmem %s0, %s316
          %s318 = smul.u32 8, %s19
        $region48: #{model_forward.1} parent=43 // pred_fallthru
          _
        // Predicated region
        $region49: #{model_forward.1} parent=43 // pred_check
          %p319 = pneg %p65
        $region50: #{model_forward.1} parent=43 // pred_check_branch
          %321 = sbr.rel (%p319) target = $region52
        $region51: #{model_forward.1} parent=43 // pred_region
          %s322 = smul.u32 4, %s19
          %p323 = scmp.lt.s32.totalorder %s322, 7
          %s324 = scalar_select %p323, %s322, 7
          %s325 = smul.addr %s324, 8
          %s326 = scalar_lea.vmem %s1, %s325
          %s327 = smul.u32 4, %s19
        $region52: #{model_forward.1} parent=43 // pred_fallthru
          _
        // Predicated region
        $region53: #{model_forward.1} parent=43 // pred_check
          %p328 = pneg %p91
        $region54: #{model_forward.1} parent=43 // pred_check_branch
          %330 = sbr.rel (%p328) target = $region56
        $region55: #{model_forward.1} parent=43 // pred_region
          %s331 = smul.u32 4, %s19
          %p332 = scmp.lt.s32.totalorder %s331, 7
          %s333 = scalar_select %p332, %s331, 7
          %s334 = scalar_lea.vmem %s2, %s333
          %s335 = smul.u32 4, %s19
        $region56: #{model_forward.1} parent=43 // pred_fallthru
          _
      $region44: #{model_forward.1} parent=5 // pred_fallthru
        _
      %p336 = scmp.le.s32.totalorder 1, %s19
      %p337 = scmp.lt.s32.totalorder %s19, 3
      %p338 = pnand %p336, %p337
      %p339 = pneg %p338
      // Predicated region
      $region57: #{model_forward.1} parent=5 // pred_check
        _
      $region58: #{model_forward.1} parent=5 // pred_check_branch
        %341 = sbr.rel (%p338) target = $region60
      $region59: #{model_forward.1} parent=5 // pred_region
        %s342 = ssub.s32 %s19, 1
        %s343 = smul.u32 8, %s24
        %p344 = scmp.lt.s32.totalorder %s343, 15
        %s345 = scalar_select %p344, %s343, 15
        %s346 = smul.addr %s345, 8
        %s347 = scalar_lea.vmem %s0, %s346
        %p348 = pneg %p45
        %p349 = pneg %p42
        %s350 = smul.u32 4, %s24
        %p351 = scmp.lt.s32.totalorder %s350, 7
        %s352 = scalar_select %p351, %s350, 7
        %s353 = smul.addr %s352, 8
        %s354 = scalar_lea.vmem %s1, %s353
        %p355 = pneg %p71
        %p356 = pneg %p68
        %s357 = smul.u32 4, %s24
        %p358 = scmp.lt.s32.totalorder %s357, 7
        %s359 = scalar_select %p358, %s357, 7
        %s360 = scalar_lea.vmem %s2, %s359
        %p361 = pneg %p97
        %p362 = pneg %p94
        %p363 = pneg %p118
        %p364 = pneg %p115
        %p365 = pneg %p139
        %p366 = pneg %p136
        %p367 = pneg %p160
        %p368 = pneg %p157
        %p369 = pneg %p181
        %p370 = pneg %p178
        %p371 = pneg %p202
        %p372 = pneg %p199
        %p373 = pneg %p223
        %p374 = pneg %p220
        %p375 = pneg %p244
        %p376 = pneg %p241
        %p377 = pneg %p270
        %p378 = pneg %p267
        %s379 = sand.u32 %s257, 1
        %s380 = scalar_lea.sflag [#allocation3], %s379
        %s381 = sand.u32 %s257, 1
        %s382 = smul.addr %s381, 32
        %s383 = scalar_lea.vmem [#allocation2], %s382
        %s384 = smul.u32 8, %s24
        %p385 = scmp.lt.s32.totalorder %s384, 15
        %s386 = scalar_select %p385, %s384, 15
        %s387 = smul.addr %s386, 8
        %s388 = scalar_lea.vmem %s0, %s387
        %s389 = smul.u32 8, %s24
        %s390 = smul.u32 4, %s24
        %p391 = scmp.lt.s32.totalorder %s390, 7
        %s392 = scalar_select %p391, %s390, 7
        %s393 = smul.addr %s392, 8
        %s394 = scalar_lea.vmem %s1, %s393
        %s395 = smul.u32 4, %s24
        %s396 = smul.u32 4, %s24
        %p397 = scmp.lt.s32.totalorder %s396, 7
        %s398 = scalar_select %p397, %s396, 7
        %s399 = scalar_lea.vmem %s2, %s398
        %s400 = smul.u32 4, %s24
        %s401 = smul.u32 4, %s24
        %v403 = vld [vmem:[%s388] sm:$0xff]
        %v404 = vld [vmem:[%s388 + $0x8] sm:$0xff]
        %v405 = vld [vmem:[%s388 + $0x10] sm:$0xff]
        %v406 = vld [vmem:[%s388 + $0x18] sm:$0xff]
        %v407 = vld [vmem:[%s388 + $0x20] sm:$0xff]
        %v408 = vld [vmem:[%s388 + $0x28] sm:$0xff]
        %v409 = vld [vmem:[%s388 + $0x30] sm:$0xff]
        %v410 = vld [vmem:[%s388 + $0x38] sm:$0xff]
        %v411 = vlaneseq
        %v412 = vand.u32 %v411, 127
        %413 = vset.pattern.permute.xlu0 0
        %414 = vperm.xlu0 %413, %v403
        %v415 = vpop.permute.xlu0 %414
        %416 = vset.pattern.permute.xlu0 0
        %417 = vperm.xlu0 %416, %v404
        %v418 = vpop.permute.xlu0 %417
        %419 = vset.pattern.permute.xlu0 0
        %420 = vperm.xlu0 %419, %v405
        %v421 = vpop.permute.xlu0 %420
        %422 = vset.pattern.permute.xlu0 0
        %423 = vperm.xlu0 %422, %v406
        %v424 = vpop.permute.xlu0 %423
        %425 = vset.pattern.permute.xlu0 0
        %426 = vperm.xlu0 %425, %v407
        %v427 = vpop.permute.xlu0 %426
        %428 = vset.pattern.permute.xlu0 0
        %429 = vperm.xlu0 %428, %v408
        %v430 = vpop.permute.xlu0 %429
        %431 = vset.pattern.permute.xlu0 0
        %432 = vperm.xlu0 %431, %v409
        %v433 = vpop.permute.xlu0 %432
        %434 = vset.pattern.permute.xlu0 0
        %435 = vperm.xlu0 %434, %v410
        %v436 = vpop.permute.xlu0 %435
        %vm437 = vcmp.eq.s32.totalorder %v415, %v412
        %vm438 = vcmp.eq.s32.totalorder %v418, %v412
        %vm439 = vcmp.eq.s32.totalorder %v421, %v412
        %vm440 = vcmp.eq.s32.totalorder %v424, %v412
        %vm441 = vcmp.eq.s32.totalorder %v427, %v412
        %vm442 = vcmp.eq.s32.totalorder %v430, %v412
        %vm443 = vcmp.eq.s32.totalorder %v433, %v412
        %vm444 = vcmp.eq.s32.totalorder %v436, %v412
        %v445 = vsel %vm437, 1, 0
        %v446 = vsel %vm438, 1, 0
        %v447 = vsel %vm439, 1, 0
        %v448 = vsel %vm440, 1, 0
        %v449 = vsel %vm441, 1, 0
        %v450 = vsel %vm442, 1, 0
        %v451 = vsel %vm443, 1, 0
        %v452 = vsel %vm444, 1, 0
        %v453 = vcvt.s32.f32 %v445
        %v454 = vcvt.s32.f32 %v446
        %v455 = vcvt.s32.f32 %v447
        %v456 = vcvt.s32.f32 %v448
        %v457 = vcvt.s32.f32 %v449
        %v458 = vcvt.s32.f32 %v450
        %v459 = vcvt.s32.f32 %v451
        %v460 = vcvt.s32.f32 %v452
        %v461 = vpack.c.bf16 %v454, %v453
        %v462 = vpack.c.bf16 %v456, %v455
        %v463 = vpack.c.bf16 %v458, %v457
        %v464 = vpack.c.bf16 %v460, %v459
        %v465 = vld [vmem:[%s394] sm:$0xff]
        %v466 = vld [vmem:[%s394 + $0x8] sm:$0xff]
        %v467 = vld [vmem:[%s394 + $0x10] sm:$0xff]
        %v468 = vld [vmem:[%s394 + $0x18] sm:$0xff]
        %469 = vset.pattern.permute.xlu0 0
        %470 = vperm.xlu0 %469, %v465
        %v471 = vpop.permute.xlu0 %470
        %472 = vset.pattern.permute.xlu0 0
        %473 = vperm.xlu0 %472, %v466
        %v474 = vpop.permute.xlu0 %473
        %475 = vset.pattern.permute.xlu0 0
        %476 = vperm.xlu0 %475, %v467
        %v477 = vpop.permute.xlu0 %476
        %478 = vset.pattern.permute.xlu0 0
        %479 = vperm.xlu0 %478, %v468
        %v480 = vpop.permute.xlu0 %479
        %vm481 = vcmp.eq.s32.totalorder %v471, %v412
        %vm482 = vcmp.eq.s32.totalorder %v474, %v412
        %vm483 = vcmp.eq.s32.totalorder %v477, %v412
        %vm484 = vcmp.eq.s32.totalorder %v480, %v412
        %v485 = vsel %vm481, 1, 0
        %v486 = vsel %vm482, 1, 0
        %v487 = vsel %vm483, 1, 0
        %v488 = vsel %vm484, 1, 0
        %v489 = vcvt.s32.f32 %v485
        %v490 = vcvt.s32.f32 %v486
        %v491 = vcvt.s32.f32 %v487
        %v492 = vcvt.s32.f32 %v488
        %v493 = vpack.c.bf16 %v490, %v489
        %v494 = vpack.c.bf16 %v492, %v491
        %v495 = vld [vmem:[%s3] sm:$0xf]
        %v496 = vld [vmem:[%s3 + $0x4] sm:$0xf]
        %v497 = vld [vmem:[%s3 + $0x8] sm:$0xf]
        %v498 = vld [vmem:[%s3 + $0xc] sm:$0xf]
        %v499 = vld [vmem:[%s3 + $0x10] sm:$0xf]
        %v500 = vld [vmem:[%s3 + $0x14] sm:$0xf]
        %v501 = vld [vmem:[%s3 + $0x18] sm:$0xf]
        %v502 = vld [vmem:[%s3 + $0x1c] sm:$0xf]
        %v503 = vld [vmem:[%s4] sm:$0x1]
        %v505 = vperm.slane %v503, 0
        %v515 = vunpack.c.l.b16 %v495
        %v516 = vunpack.c.l.b16 %v496
        %v517 = vunpack.c.l.b16 %v497
        %v518 = vunpack.c.l.b16 %v498
        %v519 = vunpack.c.l.b16 %v499
        %v520 = vunpack.c.l.b16 %v500
        %v521 = vunpack.c.l.b16 %v501
        %v522 = vunpack.c.l.b16 %v502
        %v523 = vpack.c.b16 %v516, %v515
        %v524 = vpack.c.b16 %v518, %v517
        %v525 = vpack.c.b16 %v520, %v519
        %v526 = vpack.c.b16 %v522, %v521
        %vm531 = vcmask 523264
        %v533 = vsel %vm531, %v461, 0
        %v536 = vsel %vm531, %v462, 0
        %v539 = vsel %vm531, %v463, 0
        %v542 = vsel %vm531, %v464, 0
        %544 = vmatpush.bf16.msra.mxu0 0
        %545 = vmatpush.bf16.msra.mxu0 0
        %546 = vmatpush.bf16.msra.mxu0 0
        %547 = vmatpush.bf16.msra.mxu0 0
        %548 = vmatpush.bf16.msra.mxu0 %v526
        %549 = vmatpush.bf16.msra.mxu0 %v525
        %550 = vmatpush.bf16.msra.mxu0 %v524
        %551 = vmatpush.bf16.msra.mxu0 %v523
        %552 = vmatmul.bf16.gmra.mxu0 %v533
        %v553 = vpop.f32.mrf.mxu0
        %v554 = vadd.f32 %v505, %v553
        %v555 = vpop.f32.mrf.mxu0
        %v556 = vadd.f32 %v505, %v555
        %557 = vmatmul.bf16.gmra.mxu0 %v536
        %v558 = vpop.f32.mrf.mxu0
        %v559 = vadd.f32 %v505, %v558
        %v560 = vpop.f32.mrf.mxu0
        %v561 = vadd.f32 %v505, %v560
        %562 = vmatmul.bf16.gmra.mxu0 %v539
        %v563 = vpop.f32.mrf.mxu0
        %v564 = vadd.f32 %v505, %v563
        %v565 = vpop.f32.mrf.mxu0
        %v566 = vadd.f32 %v505, %v565
        %567 = vmatmul.bf16.gmra.mxu0 %v542
        %v568 = vpop.f32.mrf.mxu0
        %v569 = vadd.f32 %v505, %v568
        %v570 = vpop.f32.mrf.mxu0
        %v571 = vadd.f32 %v505, %v570
        %572 = vdwg.mxu0
        %v573 = vmax.f32 %v554, 0.0
        %v574 = vmax.f32 %v556, 0.0
        %v575 = vmax.f32 %v559, 0.0
        %v576 = vmax.f32 %v561, 0.0
        %v577 = vmax.f32 %v564, 0.0
        %v578 = vmax.f32 %v566, 0.0
        %v579 = vmax.f32 %v569, 0.0
        %v580 = vmax.f32 %v571, 0.0
        %v581 = vld [vmem:[%s5] sm:$0xf]
        %v582 = vld [vmem:[%s5 + $0x4] sm:$0xf]
        %v583 = vld [vmem:[%s5 + $0x8] sm:$0xf]
        %v584 = vld [vmem:[%s5 + $0xc] sm:$0xf]
        %v585 = vld [vmem:[%s5 + $0x10] sm:$0xf]
        %v586 = vld [vmem:[%s5 + $0x14] sm:$0xf]
        %v587 = vld [vmem:[%s5 + $0x18] sm:$0xf]
        %v588 = vld [vmem:[%s5 + $0x1c] sm:$0xf]
        %v589 = vld [vmem:[%s5 + $0x20] sm:$0xf]
        %v590 = vld [vmem:[%s5 + $0x24] sm:$0xf]
        %v591 = vld [vmem:[%s5 + $0x28] sm:$0xf]
        %v592 = vld [vmem:[%s5 + $0x2c] sm:$0xf]
        %v593 = vld [vmem:[%s5 + $0x30] sm:$0xf]
        %v594 = vld [vmem:[%s5 + $0x34] sm:$0xf]
        %v595 = vld [vmem:[%s5 + $0x38] sm:$0xf]
        %v596 = vld [vmem:[%s5 + $0x3c] sm:$0xf]
        %v613 = vunpack.c.l.b16 %v581
        %v614 = vunpack.c.l.b16 %v582
        %v615 = vunpack.c.l.b16 %v583
        %v616 = vunpack.c.l.b16 %v584
        %v617 = vunpack.c.l.b16 %v585
        %v618 = vunpack.c.l.b16 %v586
        %v619 = vunpack.c.l.b16 %v587
        %v620 = vunpack.c.l.b16 %v588
        %v621 = vunpack.c.l.b16 %v589
        %v622 = vunpack.c.l.b16 %v590
        %v623 = vunpack.c.l.b16 %v591
        %v624 = vunpack.c.l.b16 %v592
        %v625 = vunpack.c.l.b16 %v593
        %v626 = vunpack.c.l.b16 %v594
        %v627 = vunpack.c.l.b16 %v595
        %v628 = vunpack.c.l.b16 %v596
        %v629 = vpack.c.b16 %v614, %v613
        %v630 = vpack.c.b16 %v616, %v615
        %v631 = vpack.c.b16 %v618, %v617
        %v632 = vpack.c.b16 %v620, %v619
        %v633 = vpack.c.b16 %v622, %v621
        %v634 = vpack.c.b16 %v624, %v623
        %v635 = vpack.c.b16 %v626, %v625
        %v636 = vpack.c.b16 %v628, %v627
        %645 = vmatpush.bf16.msra.mxu0 %v636
        %646 = vmatpush.bf16.msra.mxu0 %v635
        %647 = vmatpush.bf16.msra.mxu0 %v634
        %648 = vmatpush.bf16.msra.mxu0 %v633
        %649 = vmatpush.bf16.msra.mxu0 %v632
        %650 = vmatpush.bf16.msra.mxu0 %v631
        %651 = vmatpush.bf16.msra.mxu0 %v630
        %652 = vmatpush.bf16.msra.mxu0 %v629
        %653 = vmatmul.bf16.gmra.mxu0 %v493
        %v654 = vpop.f32.mrf.mxu0
        %v655 = vadd.f32 0.0, %v654
        %v656 = vpop.f32.mrf.mxu0
        %v657 = vadd.f32 0.0, %v656
        %658 = vmatmul.bf16.gmra.mxu0 %v494
        %v659 = vpop.f32.mrf.mxu0
        %v660 = vadd.f32 0.0, %v659
        %v661 = vpop.f32.mrf.mxu0
        %v662 = vadd.f32 0.0, %v661
        %663 = vdwg.mxu0
        %v664 = vpack.c.bf16 %v657, %v655
        %v665 = vpack.c.bf16 %v662, %v660
        %v666 = vld [vmem:[%s6] sm:$0xf]
        %v667 = vld [vmem:[%s6 + $0x4] sm:$0xf]
        %v668 = vld [vmem:[%s6 + $0x8] sm:$0xf]
        %v669 = vld [vmem:[%s6 + $0xc] sm:$0xf]
        %v674 = vunpack.c.l.b16 %v666
        %v675 = vunpack.c.l.b16 %v667
        %v676 = vunpack.c.l.b16 %v668
        %v677 = vunpack.c.l.b16 %v669
        %v678 = vpack.c.b16 %v675, %v674
        %v679 = vpack.c.b16 %v677, %v676
        %vm682 = vcmask 261120
        %v684 = vsel %vm682, %v664, 0
        %v687 = vsel %vm682, %v665, 0
        %689 = vmatpush.bf16.msra.mxu0 0
        %690 = vmatpush.bf16.msra.mxu0 0
        %691 = vmatpush.bf16.msra.mxu0 0
        %692 = vmatpush.bf16.msra.mxu0 0
        %693 = vmatpush.bf16.msra.mxu0 0
        %694 = vmatpush.bf16.msra.mxu0 0
        %695 = vmatpush.bf16.msra.mxu0 %v679
        %696 = vmatpush.bf16.msra.mxu0 %v678
        %697 = vmatmul.bf16.gmra.mxu0 %v684
        %v698 = vpop.f32.mrf.mxu0
        %v699 = vadd.f32 0.0, %v698
        %v700 = vpop.f32.mrf.mxu0
        %v701 = vadd.f32 0.0, %v700
        %702 = vmatmul.bf16.gmra.mxu0 %v687
        %v703 = vpop.f32.mrf.mxu0
        %v704 = vadd.f32 0.0, %v703
        %v705 = vpop.f32.mrf.mxu0
        %v706 = vadd.f32 0.0, %v705
        %707 = vdwg.mxu0
        %v708 = vpack.c.bf16 %v574, %v573
        %v709 = vpack.c.bf16 %v576, %v575
        %v710 = vpack.c.bf16 %v578, %v577
        %v711 = vpack.c.bf16 %v580, %v579
        %v712 = vld [vmem:[%s7] sm:$0xf]
        %v713 = vld [vmem:[%s7 + $0x4] sm:$0xf]
        %v714 = vld [vmem:[%s7 + $0x8] sm:$0xf]
        %v715 = vld [vmem:[%s7 + $0xc] sm:$0xf]
        %v720 = vunpack.c.l.b16 %v712
        %v721 = vunpack.c.l.b16 %v713
        %v722 = vunpack.c.l.b16 %v714
        %v723 = vunpack.c.l.b16 %v715
        %v724 = vpack.c.b16 %v721, %v720
        %v725 = vpack.c.b16 %v723, %v722
        %v729 = vsel %vm682, %v708, 0
        %v732 = vsel %vm682, %v709, 0
        %v735 = vsel %vm682, %v710, 0
        %v738 = vsel %vm682, %v711, 0
        %740 = vmatpush.bf16.msra.mxu0 0
        %741 = vmatpush.bf16.msra.mxu0 0
        %742 = vmatpush.bf16.msra.mxu0 0
        %743 = vmatpush.bf16.msra.mxu0 0
        %744 = vmatpush.bf16.msra.mxu0 0
        %745 = vmatpush.bf16.msra.mxu0 0
        %746 = vmatpush.bf16.msra.mxu0 %v725
        %747 = vmatpush.bf16.msra.mxu0 %v724
        %748 = vmatmul.bf16.gmra.mxu0 %v729
        %v749 = vpop.f32.mrf.mxu0
        %v750 = vadd.f32 0.0, %v749
        %v751 = vpop.f32.mrf.mxu0
        %v752 = vadd.f32 0.0, %v751
        %753 = vmatmul.bf16.gmra.mxu0 %v732
        %v754 = vpop.f32.mrf.mxu0
        %v755 = vadd.f32 0.0, %v754
        %v756 = vpop.f32.mrf.mxu0
        %v757 = vadd.f32 0.0, %v756
        %758 = vmatmul.bf16.gmra.mxu0 %v735
        %v759 = vpop.f32.mrf.mxu0
        %v760 = vadd.f32 0.0, %v759
        %v761 = vpop.f32.mrf.mxu0
        %v762 = vadd.f32 0.0, %v761
        %763 = vmatmul.bf16.gmra.mxu0 %v738
        %v764 = vpop.f32.mrf.mxu0
        %v765 = vadd.f32 0.0, %v764
        %v766 = vpop.f32.mrf.mxu0
        %v767 = vadd.f32 0.0, %v766
        %768 = vdwg.mxu0
        %v770 = vsel %vm682, %v699, 0
        %v773 = vsel %vm682, %v750, 0
        %v776 = vsel %vm682, %v752, 0
        %778 = vmatpush.xpose.msra.mxu0 0.0
        %779 = vmatpush.xpose.msra.mxu0 0.0
        %780 = vmatpush.xpose.msra.mxu0 0.0
        %781 = vmatpush.xpose.msra.mxu0 0.0
        %782 = vmatpush.xpose.msra.mxu0 0.0
        %783 = vmatpush.xpose.msra.mxu0 0.0
        %784 = vmatpush.xpose.msra.mxu0 0.0
        %785 = vmatpush.xpose.msra.mxu0 0.0
        %786 = vmatpush.xpose.msra.mxu0 0.0
        %787 = vmatpush.xpose.msra.mxu0 0.0
        %788 = vmatpush.xpose.msra.mxu0 0.0
        %789 = vmatpush.xpose.msra.mxu0 0.0
        %790 = vmatpush.xpose.msra.mxu0 0.0
        %791 = vmatpush.xpose.msra.mxu0 0.0
        %792 = vmatpush.xpose.msra.mxu0 %v776
        %793 = vmatpush.xpose.msra.mxu0 %v773
        %794 = vmatmul.f32.gmra.mxu0 %v770
        %v795 = vpop.f32.mrf.mxu0
        %v796 = vadd.f32 0.0, %v795
        %797 = vdwg.mxu0
        %v799 = vsel %vm682, %v701, 0
        %v802 = vsel %vm682, %v755, 0
        %v805 = vsel %vm682, %v757, 0
        %807 = vmatpush.xpose.msra.mxu0 0.0
        %808 = vmatpush.xpose.msra.mxu0 0.0
        %809 = vmatpush.xpose.msra.mxu0 0.0
        %810 = vmatpush.xpose.msra.mxu0 0.0
        %811 = vmatpush.xpose.msra.mxu0 0.0
        %812 = vmatpush.xpose.msra.mxu0 0.0
        %813 = vmatpush.xpose.msra.mxu0 0.0
        %814 = vmatpush.xpose.msra.mxu0 0.0
        %815 = vmatpush.xpose.msra.mxu0 0.0
        %816 = vmatpush.xpose.msra.mxu0 0.0
        %817 = vmatpush.xpose.msra.mxu0 0.0
        %818 = vmatpush.xpose.msra.mxu0 0.0
        %819 = vmatpush.xpose.msra.mxu0 0.0
        %820 = vmatpush.xpose.msra.mxu0 0.0
        %821 = vmatpush.xpose.msra.mxu0 %v805
        %822 = vmatpush.xpose.msra.mxu0 %v802
        %823 = vmatmul.f32.gmra.mxu0 %v799
        %v824 = vpop.f32.mrf.mxu0
        %v825 = vadd.f32 0.0, %v824
        %826 = vdwg.mxu0
        %v828 = vsel %vm682, %v704, 0
        %v831 = vsel %vm682, %v760, 0
        %v834 = vsel %vm682, %v762, 0
        %836 = vmatpush.xpose.msra.mxu0 0.0
        %837 = vmatpush.xpose.msra.mxu0 0.0
        %838 = vmatpush.xpose.msra.mxu0 0.0
        %839 = vmatpush.xpose.msra.mxu0 0.0
        %840 = vmatpush.xpose.msra.mxu0 0.0
        %841 = vmatpush.xpose.msra.mxu0 0.0
        %842 = vmatpush.xpose.msra.mxu0 0.0
        %843 = vmatpush.xpose.msra.mxu0 0.0
        %844 = vmatpush.xpose.msra.mxu0 0.0
        %845 = vmatpush.xpose.msra.mxu0 0.0
        %846 = vmatpush.xpose.msra.mxu0 0.0
        %847 = vmatpush.xpose.msra.mxu0 0.0
        %848 = vmatpush.xpose.msra.mxu0 0.0
        %849 = vmatpush.xpose.msra.mxu0 0.0
        %850 = vmatpush.xpose.msra.mxu0 %v834
        %851 = vmatpush.xpose.msra.mxu0 %v831
        %852 = vmatmul.f32.gmra.mxu0 %v828
        %v853 = vpop.f32.mrf.mxu0
        %v854 = vadd.f32 0.0, %v853
        %855 = vdwg.mxu0
        %v857 = vsel %vm682, %v706, 0
        %v860 = vsel %vm682, %v765, 0
        %v863 = vsel %vm682, %v767, 0
        %865 = vmatpush.xpose.msra.mxu0 0.0
        %866 = vmatpush.xpose.msra.mxu0 0.0
        %867 = vmatpush.xpose.msra.mxu0 0.0
        %868 = vmatpush.xpose.msra.mxu0 0.0
        %869 = vmatpush.xpose.msra.mxu0 0.0
        %870 = vmatpush.xpose.msra.mxu0 0.0
        %871 = vmatpush.xpose.msra.mxu0 0.0
        %872 = vmatpush.xpose.msra.mxu0 0.0
        %873 = vmatpush.xpose.msra.mxu0 0.0
        %874 = vmatpush.xpose.msra.mxu0 0.0
        %875 = vmatpush.xpose.msra.mxu0 0.0
        %876 = vmatpush.xpose.msra.mxu0 0.0
        %877 = vmatpush.xpose.msra.mxu0 0.0
        %878 = vmatpush.xpose.msra.mxu0 0.0
        %879 = vmatpush.xpose.msra.mxu0 %v863
        %880 = vmatpush.xpose.msra.mxu0 %v860
        %881 = vmatmul.f32.gmra.mxu0 %v857
        %v882 = vpop.f32.mrf.mxu0
        %v883 = vadd.f32 0.0, %v882
        %884 = vdwg.mxu0
        %v885 = vmul.f32 %v796, 0.17677669
        %v886 = vmul.f32 %v825, 0.17677669
        %v887 = vmul.f32 %v854, 0.17677669
        %v888 = vmul.f32 %v883, 0.17677669
        %v889 = vld [vmem:[%s399] sm:$0x1]
        %v890 = vld [vmem:[%s399 + $0x1] sm:$0x1]
        %v891 = vld [vmem:[%s399 + $0x2] sm:$0x1]
        %v892 = vld [vmem:[%s399 + $0x3] sm:$0x1]
        %v897 = vperm.slane %v889, 0
        %v898 = vperm.slane %v890, 0
        %v899 = vperm.slane %v891, 0
        %v900 = vperm.slane %v892, 0
        %v905 = vadd.f32 %v885, %v897
        %v906 = vadd.f32 %v886, %v898
        %v907 = vadd.f32 %v887, %v899
        %v908 = vadd.f32 %v888, %v900
        %vm909 = vcmask 130048
        %v910 = vsel %vm909, %v905, -inf
        %911 = vmax.xlane.f32.xlu0 %v910
        %v912 = vpop.xlane.xlu0 %911
        %v913 = vsel %vm909, %v906, -inf
        %914 = vmax.xlane.f32.xlu0 %v913
        %v915 = vpop.xlane.xlu0 %914
        %v916 = vsel %vm909, %v907, -inf
        %917 = vmax.xlane.f32.xlu0 %v916
        %v918 = vpop.xlane.xlu0 %917
        %v919 = vsel %vm909, %v908, -inf
        %920 = vmax.xlane.f32.xlu0 %v919
        %v921 = vpop.xlane.xlu0 %920
        %v922 = vsub.f32 %v905, %v912
        %v923 = vsub.f32 %v906, %v915
        %v924 = vsub.f32 %v907, %v918
        %v925 = vsub.f32 %v908, %v921
        %v926 = vmul.f32 %v922, 1.442695
        %v927 = vpow.pop %v926
        %v928 = vmul.f32 %v923, 1.442695
        %v929 = vpow.pop %v928
        %v930 = vmul.f32 %v924, 1.442695
        %v931 = vpow.pop %v930
        %v932 = vmul.f32 %v925, 1.442695
        %v933 = vpow.pop %v932
        %v934 = vsel %vm909, %v927, 0.0
        %935 = vadd.xlane.f32.xlu0 %v934
        %v936 = vpop.xlane.xlu0 %935
        %v937 = vsel %vm909, %v929, 0.0
        %938 = vadd.xlane.f32.xlu0 %v937
        %v939 = vpop.xlane.xlu0 %938
        %v940 = vsel %vm909, %v931, 0.0
        %941 = vadd.xlane.f32.xlu0 %v940
        %v942 = vpop.xlane.xlu0 %941
        %v943 = vsel %vm909, %v933, 0.0
        %944 = vadd.xlane.f32.xlu0 %v943
        %v945 = vpop.xlane.xlu0 %944
        %v946 = vrcp.pop %v936
        %v947 = vrcp.pop %v939
        %v948 = vrcp.pop %v942
        %v949 = vrcp.pop %v945
        %v950 = vmul.f32 %v927, %v946
        %v951 = vmul.f32 %v929, %v947
        %v952 = vmul.f32 %v931, %v948
        %v953 = vmul.f32 %v933, %v949
        %v954 = vpack.c.bf16 %v950, %v950
        %v955 = vpack.c.bf16 %v951, %v951
        %v956 = vpack.c.bf16 %v952, %v952
        %v957 = vpack.c.bf16 %v953, %v953
        %v958 = vpack.c.bf16 %v750, %v750
        %v959 = vpack.c.bf16 %v752, %v752
        %v960 = vpack.c.bf16 %v755, %v755
        %v961 = vpack.c.bf16 %v757, %v757
        %v962 = vpack.c.bf16 %v760, %v760
        %v963 = vpack.c.bf16 %v762, %v762
        %v964 = vpack.c.bf16 %v765, %v765
        %v965 = vpack.c.bf16 %v767, %v767
        %v968 = vunpack.c.l.b16 %v958
        %v969 = vunpack.c.l.b16 %v959
        %v970 = vpack.c.b16 %v969, %v968
        %971 = vrot.lane.b32.xlu0 %v970, 96
        %v972 = vpop.permute.xlu0 %971
        %v975 = vsel %vm909, %v954, 0
        %977 = vmatpush.bf16.msra.mxu0 0
        %978 = vmatpush.bf16.msra.mxu0 0
        %979 = vmatpush.bf16.msra.mxu0 0
        %980 = vmatpush.bf16.msra.mxu0 0
        %981 = vmatpush.bf16.msra.mxu0 0
        %982 = vmatpush.bf16.msra.mxu0 0
        %983 = vmatpush.bf16.msra.mxu0 0
        %984 = vmatpush.bf16.msra.mxu0 %v972
        %985 = vmatmul.bf16.gmra.mxu0 %v975
        %v986 = vpop.f32.mrf.mxu0
        %v987 = vadd.f32 0.0, %v986
        %v988 = vpop.f32.mrf.mxu0
        %989 = vdwg.mxu0
        %v992 = vunpack.c.l.b16 %v960
        %v993 = vunpack.c.l.b16 %v961
        %v994 = vpack.c.b16 %v993, %v992
        %995 = vrot.lane.b32.xlu0 %v994, 96
        %v996 = vpop.permute.xlu0 %995
        %v999 = vsel %vm909, %v955, 0
        %1001 = vmatpush.bf16.msra.mxu0 0
        %1002 = vmatpush.bf16.msra.mxu0 0
        %1003 = vmatpush.bf16.msra.mxu0 0
        %1004 = vmatpush.bf16.msra.mxu0 0
        %1005 = vmatpush.bf16.msra.mxu0 0
        %1006 = vmatpush.bf16.msra.mxu0 0
        %1007 = vmatpush.bf16.msra.mxu0 0
        %1008 = vmatpush.bf16.msra.mxu0 %v996
        %1009 = vmatmul.bf16.gmra.mxu0 %v999
        %v1010 = vpop.f32.mrf.mxu0
        %v1011 = vadd.f32 0.0, %v1010
        %v1012 = vpop.f32.mrf.mxu0
        %1013 = vdwg.mxu0
        %v1016 = vunpack.c.l.b16 %v962
        %v1017 = vunpack.c.l.b16 %v963
        %v1018 = vpack.c.b16 %v1017, %v1016
        %1019 = vrot.lane.b32.xlu0 %v1018, 96
        %v1020 = vpop.permute.xlu0 %1019
        %v1023 = vsel %vm909, %v956, 0
        %1025 = vmatpush.bf16.msra.mxu0 0
        %1026 = vmatpush.bf16.msra.mxu0 0
        %1027 = vmatpush.bf16.msra.mxu0 0
        %1028 = vmatpush.bf16.msra.mxu0 0
        %1029 = vmatpush.bf16.msra.mxu0 0
        %1030 = vmatpush.bf16.msra.mxu0 0
        %1031 = vmatpush.bf16.msra.mxu0 0
        %1032 = vmatpush.bf16.msra.mxu0 %v1020
        %1033 = vmatmul.bf16.gmra.mxu0 %v1023
        %v1034 = vpop.f32.mrf.mxu0
        %v1035 = vadd.f32 0.0, %v1034
        %v1036 = vpop.f32.mrf.mxu0
        %1037 = vdwg.mxu0
        %v1040 = vunpack.c.l.b16 %v964
        %v1041 = vunpack.c.l.b16 %v965
        %v1042 = vpack.c.b16 %v1041, %v1040
        %1043 = vrot.lane.b32.xlu0 %v1042, 96
        %v1044 = vpop.permute.xlu0 %1043
        %v1047 = vsel %vm909, %v957, 0
        %1049 = vmatpush.bf16.msra.mxu0 0
        %1050 = vmatpush.bf16.msra.mxu0 0
        %1051 = vmatpush.bf16.msra.mxu0 0
        %1052 = vmatpush.bf16.msra.mxu0 0
        %1053 = vmatpush.bf16.msra.mxu0 0
        %1054 = vmatpush.bf16.msra.mxu0 0
        %1055 = vmatpush.bf16.msra.mxu0 0
        %1056 = vmatpush.bf16.msra.mxu0 %v1044
        %1057 = vmatmul.bf16.gmra.mxu0 %v1047
        %v1058 = vpop.f32.mrf.mxu0
        %v1059 = vadd.f32 0.0, %v1058
        %v1060 = vpop.f32.mrf.mxu0
        %1061 = vdwg.mxu0
        %v1062 = vadd.f32 %v987, %v655
        %v1063 = vadd.f32 %v1011, %v657
        %v1064 = vadd.f32 %v1035, %v660
        %v1065 = vadd.f32 %v1059, %v662
        %v1066 = vpack.c.bf16 %v1063, %v1062
        %v1067 = vpack.c.bf16 %v1065, %v1064
        %v1068 = vld [vmem:[%s8] sm:$0xf]
        %v1069 = vld [vmem:[%s8 + $0x4] sm:$0xf]
        %v1070 = vld [vmem:[%s8 + $0x8] sm:$0xf]
        %v1071 = vld [vmem:[%s8 + $0xc] sm:$0xf]
        %v1072 = vld [vmem:[%s9] sm:$0x1]
        %v1074 = vperm.slane %v1072, 0
        %v1080 = vunpack.c.l.b16 %v1068
        %v1081 = vunpack.c.l.b16 %v1069
        %v1082 = vunpack.c.l.b16 %v1070
        %v1083 = vunpack.c.l.b16 %v1071
        %v1084 = vpack.c.b16 %v1081, %v1080
        %v1085 = vpack.c.b16 %v1083, %v1082
        %v1089 = vsel %vm682, %v1066, 0
        %v1092 = vsel %vm682, %v1067, 0
        %1094 = vmatpush.bf16.msra.mxu0 0
        %1095 = vmatpush.bf16.msra.mxu0 0
        %1096 = vmatpush.bf16.msra.mxu0 0
        %1097 = vmatpush.bf16.msra.mxu0 0
        %1098 = vmatpush.bf16.msra.mxu0 0
        %1099 = vmatpush.bf16.msra.mxu0 0
        %1100 = vmatpush.bf16.msra.mxu0 %v1085
        %1101 = vmatpush.bf16.msra.mxu0 %v1084
        %1102 = vmatmul.bf16.gmra.mxu0 %v1089
        %v1103 = vpop.f32.mrf.mxu0
        %v1104 = vadd.f32 %v1074, %v1103
        %v1105 = vpop.f32.mrf.mxu0
        %v1106 = vadd.f32 %v1074, %v1105
        %1107 = vmatmul.bf16.gmra.mxu0 %v1092
        %v1108 = vpop.f32.mrf.mxu0
        %v1109 = vadd.f32 %v1074, %v1108
        %v1110 = vpop.f32.mrf.mxu0
        %v1111 = vadd.f32 %v1074, %v1110
        %1112 = vdwg.mxu0
        %1113 = vst [vmem:[%s383] sm:$0xff] %v1104
        %1114 = vst [vmem:[%s383 + $0x8] sm:$0xff] %v1106
        %1115 = vst [vmem:[%s383 + $0x10] sm:$0xff] %v1109
        %1116 = vst [vmem:[%s383 + $0x18] sm:$0xff] %v1111
        %s1117 = sand.u32 %s257, 1
        %s1118 = scalar_lea.sflag [#allocation3], %s1117
        %s1119 = sand.u32 %s257, 1
        %s1120 = smul.addr %s1119, 32
        %s1121 = scalar_lea.vmem [#allocation2], %s1120
        // Predicated region
        $region61: #{model_forward.1} parent=59 // pred_check
          %p1122 = pneg %p267
        $region62: #{model_forward.1} parent=59 // pred_check_branch
          %1124 = sbr.rel (%p1122) target = $region64
        $region63: #{model_forward.1} parent=59 // pred_region
          %s1125 = smul.u32 4, %s24
          %1127 = vsyncadd %s1118, 0
          %s1128 = smul.addr %s1125, 8
          %s1129 = scalar_lea.hbm %s10, %s1128
          %s1130 = sshll.u32 %s1121, 4
          %s1131 = int_to_ptr.vmem [resolvable:$true] %s1130
          %s1132 = sshll.u32 %s1129, 4
          %s1133 = int_to_ptr.hbm [resolvable:$true] %s1132
          %1138 = dma.vmem_to_hbm [thread:$0]  %s1131, 512, %s1133, %s1118, 128, 128, 8
        $region64: #{model_forward.1} parent=59 // pred_fallthru
          _
      $region60: #{model_forward.1} parent=5 // pred_fallthru
        _
      %p1139 = scmp.le.s32.totalorder 2, %s19
      // Predicated region
      $region65: #{model_forward.1} parent=5 // pred_check
        %p1140 = pneg %p1139
      $region66: #{model_forward.1} parent=5 // pred_check_branch
        %1142 = sbr.rel (%p1140) target = $region68
      $region67: #{model_forward.1} parent=5 // pred_region
        %s1143 = ssub.s32 %s19, 2
        // Predicated region
        $region69: #{model_forward.1} parent=67 // pred_check
          %p1144 = pneg %p273
        $region70: #{model_forward.1} parent=67 // pred_check_branch
          %1146 = sbr.rel (%p1144) target = $region72
        $region71: #{model_forward.1} parent=67 // pred_region
          %s1147 = sand.u32 %s258, 1
          %s1148 = scalar_lea.sflag [#allocation3], %s1147
          %s1149 = sand.u32 %s258, 1
          %s1150 = smul.addr %s1149, 32
          %s1151 = scalar_lea.vmem [#allocation2], %s1150
          %1153 = dma.done %s1148, 512
        $region72: #{model_forward.1} parent=67 // pred_fallthru
          _
      $region68: #{model_forward.1} parent=5 // pred_fallthru
        _
    $region6: #{model_forward.1} parent=1 // loop_footer
      %s23 = sadd.s32 1, %s19
    $region7: #{model_forward.1} parent=1 // loop_footer_branch
      %18 = sbr.rel target = $region3
    $region8: #{model_forward.1} parent=1 // loop_exit
      _
    %1154 = vsyncpa [#allocation3], 1
    %s1155 = scalar_lea.sflag [#allocation3], 1
    %1156 = vsyncpa %s1155, 1

</llo_original>
